<compile_context>
chip_gen: v7x
topology: tpu7x:2x2x1
jax: 0.10.0
libtpu: 0.0.40
codegen_flags: <defaults>
</compile_context>

<pallas_src>
import functools

import numpy as np
import jax
import jax.numpy as jnp
from jax import lax
from jax.experimental import pallas as pl
from jax.experimental.pallas import tpu as pltpu

_LANE = 128
_SUBLANE = 8


def _round_up(x, m):
    return ((x + m - 1) // m) * m


def _cdiv(a, b):
    return -(-a // b)


def _num_tensorcores():
    """Best-effort TensorCore count of the local chip (v7x has 2 per chip)."""
    try:
        dev = jax.devices()[0]
        for attr in ("num_cores", "core_count"):
            v = getattr(dev, attr, None)
            if isinstance(v, int) and v > 0:
                return v
    except Exception:
        pass
    return 1


# ----------------------------------------------------------------------------
# Kernels
# ----------------------------------------------------------------------------
def _grouped_kernel(x_ref, wqkv_ref, bqkv_ref, mbias_ref, o_ref,
                    *, L, E, PAD, nb, cdt):
    """Self-attention for a group of nb batch elements (nb % 8 == 0).

    x_ref: (L, nb, E) block read straight from the user's (L, N, E) layout
    (no wrapper-side transpose / concat HBM pass).  Rows end up in (l, n)
    order, n fastest; the (nb*L, nb*L) additive mask keeps attention
    block-diagonal per batch element.
    """
    R = nb * L
    # nb is a multiple of 8, so collapsing (L, nb, E) -> (R, E) is layout
    # trivial (same class of reshape as the previously proven kernel).
    x2d = x_ref[...].reshape(R, E).astype(cdt)

    # Fused QKV projection.  Each section of wqkv is zero-padded to a full
    # 128-lane tile so the slices below are whole lane tiles.  Wq/bq already
    # carry 1/sqrt(E); Wv/bv carry the folded output projection (Wv@Wo,
    # bv@Wo + bo) so there is no separate out-proj matmul.
    qkv = jnp.dot(x2d, wqkv_ref[...], preferred_element_type=jnp.float32)
    qkv = qkv + bqkv_ref[...]                                   # (R, 3*PAD)

    q = qkv[:, 0 * PAD:1 * PAD].astype(cdt)
    k = qkv[:, 1 * PAD:2 * PAD].astype(cdt)
    v = qkv[:, 2 * PAD:3 * PAD].astype(cdt)

    # One dense (R, R) MXU matmul instead of nb tiny (L, L) batched matmuls;
    # zero-padded lanes of q/k contribute nothing.
    s = lax.dot_general(q, k, (((1,), (1,)), ((), ())),
                        preferred_element_type=jnp.float32)     # (R, R)
    s = s + mbias_ref[...]            # 0 within a batch element, -1e30 across

    # Numerically stable, exact softmax (exact normalization is required by
    # the folded output bias).
    s = s - jnp.max(s, axis=-1, keepdims=True)
    p = jnp.exp(s)
    p = p / jnp.sum(p, axis=-1, keepdims=True)

    ctx = jnp.dot(p.astype(cdt), v,
                  preferred_element_type=jnp.float32)           # (R, PAD)

    # Lane-dense, batch-major output: row n of the block is batch element n's
    # (L, E) activations flattened into L*E lanes, so stores are unmasked and
    # the output DMA moves dense slabs.
    pieces = [ctx[l * nb:(l + 1) * nb, :E] for l in range(L)]   # (nb, E) each
    o_ref[...] = jnp.concatenate(pieces, axis=-1).astype(o_ref.dtype)


def _single_kernel(x_ref, wqkv_ref, bqkv_ref, o_ref, *, E, PAD, cdt):
    """Fallback: one batch element per grid step (used for long sequences)."""
    x = x_ref[...].astype(cdt)                                  # (L, E)
    qkv = jnp.dot(x, wqkv_ref[...], preferred_element_type=jnp.float32)
    qkv = qkv + bqkv_ref[...]
    q = qkv[:, 0 * PAD:1 * PAD].astype(cdt)
    k = qkv[:, 1 * PAD:2 * PAD].astype(cdt)
    v = qkv[:, 2 * PAD:3 * PAD].astype(cdt)
    s = lax.dot_general(q, k, (((1,), (1,)), ((), ())),
                        preferred_element_type=jnp.float32)     # (L, L)
    s = s - jnp.max(s, axis=-1, keepdims=True)
    p = jnp.exp(s)
    p = p / jnp.sum(p, axis=-1, keepdims=True)
    ctx = jnp.dot(p.astype(cdt), v, preferred_element_type=jnp.float32)
    o_ref[...] = ctx[:, :E].astype(o_ref.dtype)
    # TODO(synk): very long sequences (L >~ 2048) would need a key-tiled
    # online-softmax (flash) variant instead of materializing (L, L) scores.


# ----------------------------------------------------------------------------
# Block / mode selection (VMEM- and core-count-aware)
# ----------------------------------------------------------------------------
def _choose_mode(N, L, E, in_itemsize, cdt_itemsize, num_cores):
    PAD = _round_up(E, _LANE)
    R_MAX = 512       # caps the O(R^2) cost of the dense masked-score block
    L_MAX = 64        # beyond this the unrolled output pack gets unwieldy
    budget = (6 if num_cores >= 2 else 12) * 1024 * 1024  # VMEM working set

    def fits(nb):
        R = nb * L
        vmem = (2 * L * nb * E * in_itemsize          # double-buffered input
                + 2 * nb * L * E * 4                  # double-buffered output
                + R * 3 * PAD * (4 + cdt_itemsize)    # qkv + operand casts
                + 5 * R * R * 4                       # scores/probs/mask
                + R * PAD * (4 + cdt_itemsize))       # ctx
        return R <= R_MAX and vmem <= budget

    if L <= L_MAX and fits(_SUBLANE):
        nb = _SUBLANE
        nb_cap = _round_up(N, _SUBLANE)
        while nb + _SUBLANE <= nb_cap and fits(nb + _SUBLANE):
            nb += _SUBLANE
        if num_cores >= 2 and nb_cap >= 2 * _SUBLANE:
            # keep the grid >= 2 so both TensorCores get work (v7x)
            nb = min(nb, max(_SUBLANE, (nb_cap // (2 * _SUBLANE)) * _SUBLANE))
        return "grouped", nb
    return "single", 1


# ----------------------------------------------------------------------------
# Per-tensor wrapper
# ----------------------------------------------------------------------------
def _self_attention_batchfirst(x_lne, wqkv, bqkv, compute_dtype, force_mode=None):
    """Self-attention of one (L, N, E) tensor; returns the batch-major buffer
    (equivalent to PyTorch's `attn.transpose(0, 1)` contiguous data), f32."""
    L, N, E = x_lne.shape
    PAD = wqkv.shape[1] // 3
    cdt = jnp.dtype(compute_dtype)
    mode, nb = _choose_mode(N, L, E, x_lne.dtype.itemsize, cdt.itemsize,
                            _num_tensorcores())
    if force_mode == "single":
        mode, nb = "single", 1
    elif force_mode == "grouped" and mode != "grouped":
        mode, nb = "grouped", _SUBLANE

    cparams = pltpu.CompilerParams(
        dimension_semantics=("parallel",),
        vmem_limit_bytes=32 * 1024 * 1024)

    if mode == "grouped":
        n_pad = _cdiv(N, nb) * nb
        if n_pad != N:   # only extra input pass: batch not a multiple of 8
            x_lne = jnp.pad(x_lne, ((0, 0), (0, n_pad - N), (0, 0)))
        grid = n_pad // nb
        R = nb * L

        # Constant block-diagonal additive mask (0 same batch, -1e30 across),
        # built once on the host; it stays resident in VMEM across grid steps.
        r = np.arange(R)
        same = (r[:, None] % nb) == (r[None, :] % nb)
        mbias = jnp.asarray(
            np.where(same, np.float32(0.0), np.float32(-1e30)),
            dtype=jnp.float32)

        kernel = functools.partial(_grouped_kernel, L=L, E=E, PAD=PAD,
                                   nb=nb, cdt=cdt)
        cost = pl.CostEstimate(
            flops=int(grid * (2 * R * E * 3 * PAD + 4 * R * R * PAD)),
            transcendentals=int(grid * R * R),
            bytes_accessed=int(n_pad * L * E * (x_lne.dtype.itemsize + 4)
                               + 3 * PAD * (E * cdt.itemsize + 4)
                               + R * R * 4))
        y = pl.pallas_call(
            kernel,
            out_shape=jax.ShapeDtypeStruct((n_pad, L * E), jnp.float32),
            grid_spec=pltpu.PrefetchScalarGridSpec(
                num_scalar_prefetch=0,
                grid=(grid,),
                in_specs=[
                    pl.BlockSpec((L, nb, E), lambda b: (0, b, 0)),     # x
                    pl.BlockSpec((E, 3 * PAD), lambda b: (0, 0)),      # Wqkv
                    pl.BlockSpec((1, 3 * PAD), lambda b: (0, 0)),      # bqkv
                    pl.BlockSpec((R, R), lambda b: (0, 0)),            # mask
                ],
                out_specs=pl.BlockSpec((nb, L * E), lambda b: (b, 0)),
            ),
            compiler_params=cparams,
            cost_estimate=cost,
        )(x_lne, wqkv, bqkv, mbias)
        return y[:N] if n_pad != N else y

    # "single" mode: one batch element per grid step, pure 2D math.
    kernel = functools.partial(_single_kernel, E=E, PAD=PAD, cdt=cdt)
    cost = pl.CostEstimate(
        flops=int(N * (2 * L * E * 3 * PAD + 4 * L * L * PAD)),
        transcendentals=int(N * L * L),
        bytes_accessed=int(N * L * E * (x_lne.dtype.itemsize + 4)
                           + 3 * PAD * (E * cdt.itemsize + 4)))
    y = pl.pallas_call(
        kernel,
        out_shape=jax.ShapeDtypeStruct((N, L, E), jnp.float32),
        grid_spec=pltpu.PrefetchScalarGridSpec(
            num_scalar_prefetch=0,
            grid=(N,),
            in_specs=[
                pl.BlockSpec((L, None, E), lambda b: (0, b, 0)),
                pl.BlockSpec((E, 3 * PAD), lambda b: (0, 0)),
                pl.BlockSpec((1, 3 * PAD), lambda b: (0, 0)),
            ],
            out_specs=pl.BlockSpec((None, L, E), lambda b: (b, 0, 0)),
        ),
        compiler_params=cparams,
        cost_estimate=cost,
    )(x_lne, wqkv, bqkv)
    return y


# ----------------------------------------------------------------------------
# Parameters: PyTorch-style raw params + packing for the kernel
# ----------------------------------------------------------------------------
def init_raw_params(input_dim, key):
    """Deterministic init matching nn.MultiheadAttention(input_dim, 1) shapes."""
    E = input_dim
    k1, k2, k3, k4 = jax.random.split(key, 4)
    in_proj_weight = jax.random.normal(k1, (3 * E, E), jnp.float32) * 0.05
    in_proj_bias = jax.random.normal(k2, (3 * E,), jnp.float32) * 0.05
    out_proj_weight = jax.random.normal(k3, (E, E), jnp.float32) * 0.05
    out_proj_bias = jax.random.normal(k4, (E,), jnp.float32) * 0.05
    return in_proj_weight, in_proj_bias, out_proj_weight, out_proj_bias


def pack_params(in_proj_weight, in_proj_bias, out_proj_weight, out_proj_bias,
                compute_dtype=jnp.float32):
    """Fuse QKV, fold 1/sqrt(E) into Q, fold (Wo, bo) into V, pad to 128 lanes."""
    E = out_proj_weight.shape[0]
    PAD = _round_up(E, _LANE)
    scale = 1.0 / np.sqrt(E)   # head_dim == E for num_heads=1

    wq = in_proj_weight[0 * E:1 * E].T * scale
    wk = in_proj_weight[1 * E:2 * E].T
    wv = in_proj_weight[2 * E:3 * E].T
    wo = out_proj_weight.T
    bq = in_proj_bias[0 * E:1 * E] * scale
    bk = in_proj_bias[1 * E:2 * E]
    bv = in_proj_bias[2 * E:3 * E]

    # Fold output projection: out = P @ (x @ (Wv Wo) + (bv Wo + bo))
    wv = wv @ wo
    bv = bv @ wo + out_proj_bias

    pad_w = lambda w: jnp.pad(w, ((0, 0), (0, PAD - E)))
    pad_b = lambda b: jnp.pad(b, ((0, PAD - E),))
    wqkv = jnp.concatenate([pad_w(wq), pad_w(wk), pad_w(wv)],
                           axis=1).astype(compute_dtype)             # (E, 3*PAD)
    bqkv = jnp.concatenate([pad_b(bq), pad_b(bk), pad_b(bv)]
                           ).reshape(1, 3 * PAD).astype(jnp.float32)  # (1, 3*PAD)
    return wqkv, bqkv


# ----------------------------------------------------------------------------
# Module forward: SelfAttentionConcatenation
# ----------------------------------------------------------------------------
def self_attention_concatenation(params, *tensors, compute_dtype=jnp.float32,
                                 force_mode=None):
    """Each input tensor: (L, N, E). Output: (L, sum_of_Ns, E) (PyTorch-equal)."""
    wqkv, bqkv = params
    outs = []
    for t in tensors:
        L, N, E = t.shape
        y = _self_attention_batchfirst(t, wqkv, bqkv, compute_dtype, force_mode)
        # PyTorch: attn_out.transpose(0,1).reshape(-1, N, E) == the batch-major
        # buffer reinterpreted as (L, N, E).
        outs.append(jnp.reshape(y, (L, N, E)))
    return jnp.concatenate(outs, axis=1)


# ----------------------------------------------------------------------------
# Plain-JAX reference (built from the RAW PyTorch-style params; checks packing)
# ----------------------------------------------------------------------------
def _ref_attention(x_lne, raw):
    in_w, in_b, out_w, out_b = raw
    E = x_lne.shape[-1]
    x = jnp.transpose(x_lne, (1, 0, 2)).astype(jnp.float32)       # (N, L, E)
    q = x @ in_w[0 * E:1 * E].T + in_b[0 * E:1 * E]
    k = x @ in_w[1 * E:2 * E].T + in_b[1 * E:2 * E]
    v = x @ in_w[2 * E:3 * E].T + in_b[2 * E:3 * E]
    s = jnp.einsum("nld,nmd->nlm", q, k) / jnp.sqrt(jnp.float32(E))
    p = jax.nn.softmax(s, axis=-1)
    ctx = jnp.einsum("nlm,nmd->nld", p, v)
    return ctx @ out_w.T + out_b                                   # (N, L, E)


def _ref_forward(raw, *tensors):
    outs = []
    for x in tensors:
        L, N, E = x.shape
        outs.append(_ref_attention(x, raw).reshape(-1, N, E))
    return jnp.concatenate(outs, axis=1)


if __name__ == "__main__":
    L, N, E = 8, 2, 32  # seq, batch, embed (input_dim)
    key = jax.random.PRNGKey(0)
    kp, kx1, kx2 = jax.random.split(key, 3)

    raw = init_raw_params(E, kp)
    x1 = jax.random.normal(kx1, (L, N, E), jnp.float32)
    x2 = jax.random.normal(kx2, (L, N, E), jnp.float32)
    ref = _ref_forward(raw, x1, x2)

    # 1) Default path (grouped block-diagonal kernel), f32 operands.
    params_f32 = pack_params(*raw, compute_dtype=jnp.float32)
    out = jax.block_until_ready(self_attention_concatenation(params_f32, x1, x2))
    assert out.shape == (L, 2 * N, E), out.shape
    np.testing.assert_allclose(np.asarray(out), np.asarray(ref),
                               rtol=1e-4, atol=1e-4)

    # 2) Long-sequence fallback path (one batch element per grid step).
    out_single = jax.block_until_ready(
        self_attention_concatenation(params_f32, x1, x2, force_mode="single"))
    np.testing.assert_allclose(np.asarray(out_single), np.asarray(ref),
                               rtol=1e-4, atol=1e-4)

    # 3) bf16 matmul operands (recommended on v6e/v7x); accumulation stays f32.
    params_bf16 = pack_params(*raw, compute_dtype=jnp.bfloat16)
    out_bf16 = jax.block_until_ready(
        self_attention_concatenation(params_bf16, x1, x2,
                                     compute_dtype=jnp.bfloat16))
    np.testing.assert_allclose(np.asarray(out_bf16), np.asarray(ref),
                               rtol=2e-2, atol=2e-2)

    print("KERNEL_OK")
</pallas_src>

<mosaic_0001>
module attributes {stable_mosaic.version = 11 : i64} {
  func.func @_grouped_kernel(%arg0: i32, %arg1: memref<8x8x32xf32, #tpu.memory_space<vmem>>, %arg2: memref<32x384xf32, #tpu.memory_space<vmem>>, %arg3: memref<1x384xf32, #tpu.memory_space<vmem>>, %arg4: memref<64x64xf32, #tpu.memory_space<vmem>>, %arg5: memref<8x256xf32, #tpu.memory_space<vmem>>) attributes {dimension_semantics = [#tpu.dimension_semantics<parallel>], iteration_bounds = array<i64: 1>, scalar_prefetch = 0 : i64, scratch_operands = 0 : i64, tpu.core_type = #tpu.core_type<tc>, window_params = [{transform_indices = @transform_0, window_bounds = array<i64: 8, 8, 32>}, {pipeline_mode = #tpu.pipeline_mode<synchronous>, transform_indices = @transform_1, window_bounds = array<i64: 32, 384>}, {pipeline_mode = #tpu.pipeline_mode<synchronous>, transform_indices = @transform_2, window_bounds = array<i64: 1, 384>}, {pipeline_mode = #tpu.pipeline_mode<synchronous>, transform_indices = @transform_3, window_bounds = array<i64: 64, 64>}, {transform_indices = @transform_4, window_bounds = array<i64: 8, 256>}]} {
    %c0 = arith.constant 0 : index
    %c0_0 = arith.constant 0 : index
    %c0_1 = arith.constant 0 : index
    %0 = vector.load %arg1[%c0, %c0_0, %c0_1] : memref<8x8x32xf32, #tpu.memory_space<vmem>>, vector<8x8x32xf32>
    %1 = vector.shape_cast %0 : vector<8x8x32xf32> to vector<64x32xf32>
    %c0_2 = arith.constant 0 : index
    %c0_3 = arith.constant 0 : index
    %2 = vector.load %arg2[%c0_2, %c0_3] : memref<32x384xf32, #tpu.memory_space<vmem>>, vector<32x384xf32>
    %cst = arith.constant dense<0.000000e+00> : vector<64x384xf32>
    %3 = tpu.matmul %1, %2, %cst {dimension_numbers = #tpu.dot_dimension_numbers<[1], [0], [0], [1], [0, 0, 1, 1], [], []>} : vector<64x32xf32>, vector<32x384xf32>, vector<64x384xf32> -> vector<64x384xf32>
    %c0_4 = arith.constant 0 : index
    %c0_5 = arith.constant 0 : index
    %4 = vector.load %arg3[%c0_4, %c0_5] : memref<1x384xf32, #tpu.memory_space<vmem>>, vector<1x384xf32>
    %5 = vector.broadcast %4 : vector<1x384xf32> to vector<64x384xf32>
    %6 = arith.addf %3, %5 : vector<64x384xf32>
    %7 = vector.extract_strided_slice %6 {offsets = [0, 0], sizes = [64, 128], strides = [1, 1]} : vector<64x384xf32> to vector<64x128xf32>
    %8 = vector.extract_strided_slice %6 {offsets = [0, 128], sizes = [64, 128], strides = [1, 1]} : vector<64x384xf32> to vector<64x128xf32>
    %9 = vector.extract_strided_slice %6 {offsets = [0, 256], sizes = [64, 128], strides = [1, 1]} : vector<64x384xf32> to vector<64x128xf32>
    %cst_6 = arith.constant dense<0.000000e+00> : vector<64x64xf32>
    %10 = tpu.matmul %7, %8, %cst_6 {dimension_numbers = #tpu.dot_dimension_numbers<[1], [1], [0], [0], [0, 0, 1, 0], [], []>} : vector<64x128xf32>, vector<64x128xf32>, vector<64x64xf32> -> vector<64x64xf32>
    %c0_7 = arith.constant 0 : index
    %c0_8 = arith.constant 0 : index
    %11 = vector.load %arg4[%c0_7, %c0_8] : memref<64x64xf32, #tpu.memory_space<vmem>>, vector<64x64xf32>
    %12 = arith.addf %10, %11 : vector<64x64xf32>
    %cst_9 = arith.constant dense<0xFF800000> : vector<64xf32>
    %13 = vector.multi_reduction <maximumf>, %12, %cst_9 [1] : vector<64x64xf32> to vector<64xf32>
    %14 = vector.shape_cast %13 : vector<64xf32> to vector<64x1xf32>
    %15 = vector.broadcast %14 : vector<64x1xf32> to vector<64x64xf32>
    %16 = arith.subf %12, %15 : vector<64x64xf32>
    %17 = math.exp %16 : vector<64x64xf32>
    %cst_10 = arith.constant dense<0.000000e+00> : vector<64xf32>
    %18 = vector.multi_reduction <add>, %17, %cst_10 [1] : vector<64x64xf32> to vector<64xf32>
    %19 = vector.shape_cast %18 : vector<64xf32> to vector<64x1xf32>
    %20 = vector.broadcast %19 : vector<64x1xf32> to vector<64x64xf32>
    %21 = arith.divf %17, %20 : vector<64x64xf32>
    %cst_11 = arith.constant dense<0.000000e+00> : vector<64x128xf32>
    %22 = tpu.matmul %21, %9, %cst_11 {dimension_numbers = #tpu.dot_dimension_numbers<[1], [0], [0], [1], [0, 0, 1, 1], [], []>} : vector<64x64xf32>, vector<64x128xf32>, vector<64x128xf32> -> vector<64x128xf32>
    %23 = vector.extract_strided_slice %22 {offsets = [0, 0], sizes = [8, 32], strides = [1, 1]} : vector<64x128xf32> to vector<8x32xf32>
    %24 = vector.extract_strided_slice %22 {offsets = [8, 0], sizes = [8, 32], strides = [1, 1]} : vector<64x128xf32> to vector<8x32xf32>
    %25 = vector.extract_strided_slice %22 {offsets = [16, 0], sizes = [8, 32], strides = [1, 1]} : vector<64x128xf32> to vector<8x32xf32>
    %26 = vector.extract_strided_slice %22 {offsets = [24, 0], sizes = [8, 32], strides = [1, 1]} : vector<64x128xf32> to vector<8x32xf32>
    %27 = vector.extract_strided_slice %22 {offsets = [32, 0], sizes = [8, 32], strides = [1, 1]} : vector<64x128xf32> to vector<8x32xf32>
    %28 = vector.extract_strided_slice %22 {offsets = [40, 0], sizes = [8, 32], strides = [1, 1]} : vector<64x128xf32> to vector<8x32xf32>
    %29 = vector.extract_strided_slice %22 {offsets = [48, 0], sizes = [8, 32], strides = [1, 1]} : vector<64x128xf32> to vector<8x32xf32>
    %30 = vector.extract_strided_slice %22 {offsets = [56, 0], sizes = [8, 32], strides = [1, 1]} : vector<64x128xf32> to vector<8x32xf32>
    %31 = tpu.concatenate %23, %24, %25, %26, %27, %28, %29, %30 in 1 : vector<8x32xf32>, vector<8x32xf32>, vector<8x32xf32>, vector<8x32xf32>, vector<8x32xf32>, vector<8x32xf32>, vector<8x32xf32>, vector<8x32xf32> -> vector<8x256xf32>
    %c0_12 = arith.constant 0 : index
    %c0_13 = arith.constant 0 : index
    %32 = vector.load %arg5[%c0_12, %c0_13] : memref<8x256xf32, #tpu.memory_space<vmem>>, vector<8x256xf32>
    tpu.vector_store %arg5[%c0_12, %c0_13], %31 {strides = array<i32>} : memref<8x256xf32, #tpu.memory_space<vmem>>, vector<8x256xf32>,
    return
  }
  func.func @transform_0(%arg0: i32) -> (i32, i32, i32) {
    %c0_i32 = arith.constant 0 : i32
    %c0_i32_0 = arith.constant 0 : i32
    %c0_i32_1 = arith.constant 0 : i32
    return %c0_i32, %arg0, %c0_i32_0 : i32, i32, i32
  }
  func.func @transform_1(%arg0: i32) -> (i32, i32) {
    %c0_i32 = arith.constant 0 : i32
    %c0_i32_0 = arith.constant 0 : i32
    %c0_i32_1 = arith.constant 0 : i32
    return %c0_i32, %c0_i32_0 : i32, i32
  }
  func.func @transform_2(%arg0: i32) -> (i32, i32) {
    %c0_i32 = arith.constant 0 : i32
    %c0_i32_0 = arith.constant 0 : i32
    %c0_i32_1 = arith.constant 0 : i32
    return %c0_i32, %c0_i32_0 : i32, i32
  }
  func.func @transform_3(%arg0: i32) -> (i32, i32) {
    %c0_i32 = arith.constant 0 : i32
    %c0_i32_0 = arith.constant 0 : i32
    %c0_i32_1 = arith.constant 0 : i32
    return %c0_i32, %c0_i32_0 : i32, i32
  }
  func.func @transform_4(%arg0: i32) -> (i32, i32) {
    %c0_i32 = arith.constant 0 : i32
    %c0_i32_0 = arith.constant 0 : i32
    return %arg0, %c0_i32 : i32, i32
  }
}

</mosaic_0001>

<llo_original>
// kernel: tpu_custom_call.1
$region0: #{tpu_custom_call.1}
  #allocation0 [shape = 'u32[]', space=smem, size = 0x4, offset = 0x4, fixed_abs, tag = 'smem constant byte address 0x4 - core index']
  #allocation1 [shape = 'u32[144,128]{1,0:T(1,128)}', space=vmem, size = 0x12000, scoped, tag = 'internal scratch']
  %s0 = inlined_call_operand.hbm [shape: f32[8,8,32], index: 0, kind: input, shape index: {}]
  %s1 = inlined_call_operand.hbm [shape: f32[32,384], index: 1, kind: input, shape index: {}]
  %s2 = inlined_call_operand.vmem [shape: f32[1,384], index: 2, kind: input, shape index: {}]
  %s3 = inlined_call_operand.hbm [shape: f32[64,64], index: 3, kind: input, shape index: {}]
  %s4 = inlined_call_operand.hbm [shape: f32[8,256], index: 4, kind: output, shape index: {}]
  %s5 = sld [smem:[#allocation0]]
  $region38: #{tpu_custom_call.1} parent=0
    _
  %s7 = ssub.s32 1, %s5
  %s8 = scalar_select 0, %s7, %s5
  $region1: #{tpu_custom_call.1} parent=0
    #allocation2 [shape = 'u8[32768]{0}', space=vmem, size = 0x8000, scoped, tag = 'input window, operand 0, single buffered']
    #allocation3 [shape = 's32[1]{0}', space=sflag, size = 0x4, scoped, tag = 'scoped memory for tpu_custom_call.1']
    #allocation4 [shape = 's32[1]{0}', space=sflag, size = 0x4, scoped, tag = 'scoped memory for tpu_custom_call.1']
    #allocation5 [shape = 'u8[49152]{0}', space=vmem, size = 0xc000, scoped, tag = 'input window, operand 1, single buffered']
    #allocation6 [shape = 's32[1]{0}', space=sflag, size = 0x4, scoped, tag = 'scoped memory for tpu_custom_call.1']
    #allocation7 [shape = 'u8[32768]{0}', space=vmem, size = 0x8000, scoped, tag = 'input window, operand 3, single buffered']
    #allocation8 [shape = 'u8[8192]{0}', space=vmem, size = 0x2000, scoped, tag = 'output window, operand 0, single buffered']
    %9 = vsyncpa [#allocation3], 0
    %10 = vsyncpa [#allocation6], 0
    %11 = vsyncpa [#allocation4], 0
    // Predicated region
    $region2: #{tpu_custom_call.1} parent=1 // pred_check
      _
    $region3: #{tpu_custom_call.1} parent=1 // pred_check_branch
      %13 = sbr.rel (0) target = $region5
    $region4: #{tpu_custom_call.1} parent=1 // pred_region
      %s15 = ssub.s32 1024, 1024
      %16 = vsyncadd [#allocation3], %s15
      %s17 = sshll.u32 [#allocation2], 4
      %s18 = int_to_ptr.vmem [resolvable:$true] %s17
      %23 = dma.hbm_to_vmem [thread:$0]  %s0, 1024, %s18, [#allocation3], 128, 128, 8
    $region5: #{tpu_custom_call.1} parent=1 // pred_fallthru
      _
    // Predicated region
    $region6: #{tpu_custom_call.1} parent=1 // pred_check
      _
    $region7: #{tpu_custom_call.1} parent=1 // pred_check_branch
      %25 = sbr.rel (0) target = $region9
    $region8: #{tpu_custom_call.1} parent=1 // pred_region
      %s27 = ssub.s32 1536, 1536
      %28 = vsyncadd [#allocation6], %s27
      %s29 = sshll.u32 [#allocation5], 4
      %s30 = int_to_ptr.vmem [resolvable:$true] %s29
      %35 = dma.hbm_to_vmem [thread:$0]  %s1, 1536, %s30, [#allocation6], 384, 384, 24
    $region9: #{tpu_custom_call.1} parent=1 // pred_fallthru
      _
    // Predicated region
    $region10: #{tpu_custom_call.1} parent=1 // pred_check
      _
    $region11: #{tpu_custom_call.1} parent=1 // pred_check_branch
      %37 = sbr.rel (0) target = $region13
    $region12: #{tpu_custom_call.1} parent=1 // pred_region
      _
    $region13: #{tpu_custom_call.1} parent=1 // pred_fallthru
      _
    // Predicated region
    $region14: #{tpu_custom_call.1} parent=1 // pred_check
      _
    $region15: #{tpu_custom_call.1} parent=1 // pred_check_branch
      %39 = sbr.rel (0) target = $region17
    $region16: #{tpu_custom_call.1} parent=1 // pred_region
      %s41 = ssub.s32 1024, 1024
      %42 = vsyncadd [#allocation6], %s41
      %s43 = sshll.u32 [#allocation7], 4
      %s44 = int_to_ptr.vmem [resolvable:$true] %s43
      %49 = dma.hbm_to_vmem [thread:$0]  %s3, 1024, %s44, [#allocation6], 128, 128, 8
    $region17: #{tpu_custom_call.1} parent=1 // pred_fallthru
      _
    // Predicated region
    $region18: #{tpu_custom_call.1} parent=1 // pred_check
      _
    $region19: #{tpu_custom_call.1} parent=1 // pred_check_branch
      %51 = sbr.rel (0) target = $region21
    $region20: #{tpu_custom_call.1} parent=1 // pred_region
      %52 = dma.done [#allocation3], 1024
    $region21: #{tpu_custom_call.1} parent=1 // pred_fallthru
      _
    // Predicated region
    $region22: #{tpu_custom_call.1} parent=1 // pred_check
      _
    $region23: #{tpu_custom_call.1} parent=1 // pred_check_branch
      %54 = sbr.rel (0) target = $region25
    $region24: #{tpu_custom_call.1} parent=1 // pred_region
      %55 = dma.done [#allocation6], 1536
    $region25: #{tpu_custom_call.1} parent=1 // pred_fallthru
      _
    // Predicated region
    $region26: #{tpu_custom_call.1} parent=1 // pred_check
      _
    $region27: #{tpu_custom_call.1} parent=1 // pred_check_branch
      %57 = sbr.rel (0) target = $region29
    $region28: #{tpu_custom_call.1} parent=1 // pred_region
      %58 = dma.done [#allocation6], 1024
    $region29: #{tpu_custom_call.1} parent=1 // pred_fallthru
      _
    %v59 = vld [vmem:[#allocation2] sm:$0xff]
    %v60 = vld [vmem:[#allocation2 + $0x8] sm:$0xff]
    %v61 = vld [vmem:[#allocation2 + $0x10] sm:$0xff]
    %v62 = vld [vmem:[#allocation2 + $0x18] sm:$0xff]
    %v63 = vld [vmem:[#allocation2 + $0x20] sm:$0xff]
    %v64 = vld [vmem:[#allocation2 + $0x28] sm:$0xff]
    %v65 = vld [vmem:[#allocation2 + $0x30] sm:$0xff]
    %v66 = vld [vmem:[#allocation2 + $0x38] sm:$0xff]
    %v67 = vld [vmem:[#allocation5] sm:$0xff]
    %v68 = vld [vmem:[#allocation5 + $0x8] sm:$0xff]
    %v69 = vld [vmem:[#allocation5 + $0x10] sm:$0xff]
    %v70 = vld [vmem:[#allocation5 + $0x18] sm:$0xff]
    %v71 = vld [vmem:[#allocation5 + $0x20] sm:$0xff]
    %v72 = vld [vmem:[#allocation5 + $0x28] sm:$0xff]
    %v73 = vld [vmem:[#allocation5 + $0x30] sm:$0xff]
    %v74 = vld [vmem:[#allocation5 + $0x38] sm:$0xff]
    %v75 = vld [vmem:[#allocation5 + $0x40] sm:$0xff]
    %v76 = vld [vmem:[#allocation5 + $0x48] sm:$0xff]
    %v77 = vld [vmem:[#allocation5 + $0x50] sm:$0xff]
    %v78 = vld [vmem:[#allocation5 + $0x58] sm:$0xff]
    %v79 = vld [vmem:[%s2] sm:$0x7]
    %v81 = vlaneseq
    %v82 = vshrl.u32 %v81, 7
    %v83 = vsub.s32 0, %v82
    %v84 = vrot.slane %v79, %v83
    %v85 = vlaneseq
    %v86 = vshrl.u32 %v85, 7
    %v87 = vsub.s32 1, %v86
    %v88 = vrot.slane %v79, %v87
    %v89 = vlaneseq
    %v90 = vshrl.u32 %v89, 7
    %v91 = vsub.s32 2, %v90
    %v92 = vrot.slane %v79, %v91
    %vm96 = vcmask 261120
    %v98 = vsel %vm96, %v59, 0
    %v101 = vsel %vm96, %v60, 0
    %v104 = vsel %vm96, %v61, 0
    %v107 = vsel %vm96, %v62, 0
    %v110 = vsel %vm96, %v63, 0
    %v113 = vsel %vm96, %v64, 0
    %v116 = vsel %vm96, %v65, 0
    %v119 = vsel %vm96, %v66, 0
    %121 = vmatprep.subr.mxu0 %v68
    %122 = vmatpush1.msra.mxu0 %v67
    %123 = vmatprep.subr.mxu0 %v71
    %124 = vmatpush1.msra.mxu0 %v70
    %125 = vmatprep.subr.mxu0 %v74
    %126 = vmatpush1.msra.mxu0 %v73
    %127 = vmatprep.subr.mxu0 %v77
    %128 = vmatpush1.msra.mxu0 %v76
    %129 = vmatprep.subr.mxu0 0.0
    %130 = vmatpush1.msra.mxu0 0.0
    %131 = vmatprep.subr.mxu0 0.0
    %132 = vmatpush1.msra.mxu0 0.0
    %133 = vmatprep.subr.mxu0 0.0
    %134 = vmatpush1.msra.mxu0 0.0
    %135 = vmatprep.subr.mxu0 0.0
    %136 = vmatpush1.msra.mxu0 0.0
    %137 = vmatprep.subr.mxu0 0.0
    %138 = vmatpush1.msra.mxu0 0.0
    %139 = vmatprep.subr.mxu0 0.0
    %140 = vmatpush1.msra.mxu0 0.0
    %141 = vmatprep.subr.mxu0 0.0
    %142 = vmatpush1.msra.mxu0 0.0
    %143 = vmatprep.subr.mxu0 0.0
    %144 = vmatpush1.msra.mxu0 0.0
    %145 = vmatprep.subr.mxu0 0.0
    %146 = vmatpush1.msra.mxu0 0.0
    %147 = vmatprep.subr.mxu0 0.0
    %148 = vmatpush1.msra.mxu0 0.0
    %149 = vmatprep.subr.mxu0 0.0
    %150 = vmatpush1.msra.mxu0 0.0
    %151 = vmatprep.subr.mxu0 0.0
    %152 = vmatpush1.msra.mxu0 0.0
    %153 = vmatprep.subr.mxu0 0.0
    %154 = vmatpush1.msra.mxu0 0.0
    %155 = vmatprep.subr.mxu0 0.0
    %156 = vmatpush1.msra.mxu0 0.0
    %157 = vmatprep.subr.mxu0 0.0
    %158 = vmatpush1.msra.mxu0 0.0
    %159 = vmatprep.subr.mxu0 0.0
    %160 = vmatpush1.msra.mxu0 0.0
    %161 = vmatprep.subr.mxu0 0.0
    %162 = vmatpush1.msra.mxu0 0.0
    %163 = vmatprep.subr.mxu0 0.0
    %164 = vmatpush1.msra.mxu0 0.0
    %165 = vmatprep.subr.mxu0 0.0
    %166 = vmatpush1.msra.mxu0 0.0
    %167 = vmatprep.subr.mxu0 0.0
    %168 = vmatpush1.msra.mxu0 0.0
    %169 = vmatprep.subr.mxu0 0.0
    %170 = vmatpush1.msra.mxu0 0.0
    %171 = vmatprep.subr.mxu0 0.0
    %172 = vmatpush1.msra.mxu0 0.0
    %173 = vmatprep.subr.mxu0 0.0
    %174 = vmatpush1.msra.mxu0 0.0
    %175 = vmatprep.subr.mxu0 0.0
    %176 = vmatpush1.msra.mxu0 0.0
    %177 = vmatprep.subr.mxu0 0.0
    %178 = vmatpush1.msra.mxu0 0.0
    %179 = vmatprep.subr.mxu0 0.0
    %180 = vmatpush1.msra.mxu0 0.0
    %181 = vmatprep.subr.mxu0 0.0
    %182 = vmatpush1.msra.mxu0 0.0
    %183 = vmatprep.subr.mxu0 0.0
    %184 = vmatpush1.msra.mxu0 0.0
    %185 = vmatprep.mubr.f32.mxu0 0.0
    %186 = vmatmul.mubr.f32.gmra.mrb[0].mxu0 %v98
    %v187 = vpop.f32.mrb[0].mxu0
    %v188 = vadd.f32 %v84, %v187
    %v189 = vpop.f32.mrb[0].mxu0
    %v190 = vadd.f32 %v88, %v189
    %191 = vmatprep.mubr.f32.mxu0 0.0
    %192 = vmatmul.mubr.f32.gmra.mrb[0].mxu0 %v101
    %v193 = vpop.f32.mrb[0].mxu0
    %v194 = vadd.f32 %v84, %v193
    %v195 = vpop.f32.mrb[0].mxu0
    %v196 = vadd.f32 %v88, %v195
    %197 = vmatprep.mubr.f32.mxu0 0.0
    %198 = vmatmul.mubr.f32.gmra.mrb[0].mxu0 %v104
    %v199 = vpop.f32.mrb[0].mxu0
    %v200 = vadd.f32 %v84, %v199
    %v201 = vpop.f32.mrb[0].mxu0
    %v202 = vadd.f32 %v88, %v201
    %203 = vmatprep.mubr.f32.mxu0 0.0
    %204 = vmatmul.mubr.f32.gmra.mrb[0].mxu0 %v107
    %v205 = vpop.f32.mrb[0].mxu0
    %v206 = vadd.f32 %v84, %v205
    %v207 = vpop.f32.mrb[0].mxu0
    %v208 = vadd.f32 %v88, %v207
    %209 = vmatprep.mubr.f32.mxu0 0.0
    %210 = vmatmul.mubr.f32.gmra.mrb[0].mxu0 %v110
    %v211 = vpop.f32.mrb[0].mxu0
    %v212 = vadd.f32 %v84, %v211
    %v213 = vpop.f32.mrb[0].mxu0
    %v214 = vadd.f32 %v88, %v213
    %215 = vmatprep.mubr.f32.mxu0 0.0
    %216 = vmatmul.mubr.f32.gmra.mrb[0].mxu0 %v113
    %v217 = vpop.f32.mrb[0].mxu0
    %v218 = vadd.f32 %v84, %v217
    %v219 = vpop.f32.mrb[0].mxu0
    %v220 = vadd.f32 %v88, %v219
    %221 = vmatprep.mubr.f32.mxu0 0.0
    %222 = vmatmul.mubr.f32.gmra.mrb[0].mxu0 %v116
    %v223 = vpop.f32.mrb[0].mxu0
    %v224 = vadd.f32 %v84, %v223
    %v225 = vpop.f32.mrb[0].mxu0
    %v226 = vadd.f32 %v88, %v225
    %227 = vmatprep.mubr.f32.mxu0 0.0
    %228 = vmatmul.mubr.f32.gmra.mrb[0].mxu0 %v119
    %v229 = vpop.f32.mrb[0].mxu0
    %v230 = vadd.f32 %v84, %v229
    %v231 = vpop.f32.mrb[0].mxu0
    %v232 = vadd.f32 %v88, %v231
    %233 = vdwg.mxu0
    %234 = vmatprep.subr.mxu0 0.0
    %235 = vmatpush1.msra.mxu0 %v69
    %236 = vmatprep.subr.mxu0 0.0
    %237 = vmatpush1.msra.mxu0 %v72
    %238 = vmatprep.subr.mxu0 0.0
    %239 = vmatpush1.msra.mxu0 %v75
    %240 = vmatprep.subr.mxu0 0.0
    %241 = vmatpush1.msra.mxu0 %v78
    %242 = vmatprep.subr.mxu0 0.0
    %243 = vmatpush1.msra.mxu0 0.0
    %244 = vmatprep.subr.mxu0 0.0
    %245 = vmatpush1.msra.mxu0 0.0
    %246 = vmatprep.subr.mxu0 0.0
    %247 = vmatpush1.msra.mxu0 0.0
    %248 = vmatprep.subr.mxu0 0.0
    %249 = vmatpush1.msra.mxu0 0.0
    %250 = vmatprep.subr.mxu0 0.0
    %251 = vmatpush1.msra.mxu0 0.0
    %252 = vmatprep.subr.mxu0 0.0
    %253 = vmatpush1.msra.mxu0 0.0
    %254 = vmatprep.subr.mxu0 0.0
    %255 = vmatpush1.msra.mxu0 0.0
    %256 = vmatprep.subr.mxu0 0.0
    %257 = vmatpush1.msra.mxu0 0.0
    %258 = vmatprep.subr.mxu0 0.0
    %259 = vmatpush1.msra.mxu0 0.0
    %260 = vmatprep.subr.mxu0 0.0
    %261 = vmatpush1.msra.mxu0 0.0
    %262 = vmatprep.subr.mxu0 0.0
    %263 = vmatpush1.msra.mxu0 0.0
    %264 = vmatprep.subr.mxu0 0.0
    %265 = vmatpush1.msra.mxu0 0.0
    %266 = vmatprep.subr.mxu0 0.0
    %267 = vmatpush1.msra.mxu0 0.0
    %268 = vmatprep.subr.mxu0 0.0
    %269 = vmatpush1.msra.mxu0 0.0
    %270 = vmatprep.subr.mxu0 0.0
    %271 = vmatpush1.msra.mxu0 0.0
    %272 = vmatprep.subr.mxu0 0.0
    %273 = vmatpush1.msra.mxu0 0.0
    %274 = vmatprep.subr.mxu0 0.0
    %275 = vmatpush1.msra.mxu0 0.0
    %276 = vmatprep.subr.mxu0 0.0
    %277 = vmatpush1.msra.mxu0 0.0
    %278 = vmatprep.subr.mxu0 0.0
    %279 = vmatpush1.msra.mxu0 0.0
    %280 = vmatprep.subr.mxu0 0.0
    %281 = vmatpush1.msra.mxu0 0.0
    %282 = vmatprep.subr.mxu0 0.0
    %283 = vmatpush1.msra.mxu0 0.0
    %284 = vmatprep.subr.mxu0 0.0
    %285 = vmatpush1.msra.mxu0 0.0
    %286 = vmatprep.subr.mxu0 0.0
    %287 = vmatpush1.msra.mxu0 0.0
    %288 = vmatprep.subr.mxu0 0.0
    %289 = vmatpush1.msra.mxu0 0.0
    %290 = vmatprep.subr.mxu0 0.0
    %291 = vmatpush1.msra.mxu0 0.0
    %292 = vmatprep.subr.mxu0 0.0
    %293 = vmatpush1.msra.mxu0 0.0
    %294 = vmatprep.subr.mxu0 0.0
    %295 = vmatpush1.msra.mxu0 0.0
    %296 = vmatprep.subr.mxu0 0.0
    %297 = vmatpush1.msra.mxu0 0.0
    %298 = vmatprep.mubr.f32.mxu0 0.0
    %299 = vmatmul.mubr.f32.gmra.mrb[0].mxu0 %v98
    %v300 = vpop.f32.mrb[0].mxu0
    %v301 = vadd.f32 %v92, %v300
    %v302 = vpop.f32.mrb[0].mxu0
    %303 = vmatprep.mubr.f32.mxu0 0.0
    %304 = vmatmul.mubr.f32.gmra.mrb[0].mxu0 %v101
    %v305 = vpop.f32.mrb[0].mxu0
    %v306 = vadd.f32 %v92, %v305
    %v307 = vpop.f32.mrb[0].mxu0
    %308 = vmatprep.mubr.f32.mxu0 0.0
    %309 = vmatmul.mubr.f32.gmra.mrb[0].mxu0 %v104
    %v310 = vpop.f32.mrb[0].mxu0
    %v311 = vadd.f32 %v92, %v310
    %v312 = vpop.f32.mrb[0].mxu0
    %313 = vmatprep.mubr.f32.mxu0 0.0
    %314 = vmatmul.mubr.f32.gmra.mrb[0].mxu0 %v107
    %v315 = vpop.f32.mrb[0].mxu0
    %v316 = vadd.f32 %v92, %v315
    %v317 = vpop.f32.mrb[0].mxu0
    %318 = vmatprep.mubr.f32.mxu0 0.0
    %319 = vmatmul.mubr.f32.gmra.mrb[0].mxu0 %v110
    %v320 = vpop.f32.mrb[0].mxu0
    %v321 = vadd.f32 %v92, %v320
    %v322 = vpop.f32.mrb[0].mxu0
    %323 = vmatprep.mubr.f32.mxu0 0.0
    %324 = vmatmul.mubr.f32.gmra.mrb[0].mxu0 %v113
    %v325 = vpop.f32.mrb[0].mxu0
    %v326 = vadd.f32 %v92, %v325
    %v327 = vpop.f32.mrb[0].mxu0
    %328 = vmatprep.mubr.f32.mxu0 0.0
    %329 = vmatmul.mubr.f32.gmra.mrb[0].mxu0 %v116
    %v330 = vpop.f32.mrb[0].mxu0
    %v331 = vadd.f32 %v92, %v330
    %v332 = vpop.f32.mrb[0].mxu0
    %333 = vmatprep.mubr.f32.mxu0 0.0
    %334 = vmatmul.mubr.f32.gmra.mrb[0].mxu0 %v119
    %v335 = vpop.f32.mrb[0].mxu0
    %v336 = vadd.f32 %v92, %v335
    %v337 = vpop.f32.mrb[0].mxu0
    %338 = vdwg.mxu0
    %v339 = vld [vmem:[#allocation7] sm:$0xff]
    %v340 = vld [vmem:[#allocation7 + $0x8] sm:$0xff]
    %v341 = vld [vmem:[#allocation7 + $0x10] sm:$0xff]
    %v342 = vld [vmem:[#allocation7 + $0x18] sm:$0xff]
    %v343 = vld [vmem:[#allocation7 + $0x20] sm:$0xff]
    %v344 = vld [vmem:[#allocation7 + $0x28] sm:$0xff]
    %v345 = vld [vmem:[#allocation7 + $0x30] sm:$0xff]
    %v346 = vld [vmem:[#allocation7 + $0x38] sm:$0xff]
    %347 = vmatprep.subr.mxu0 0.0
    %348 = vmatpush1.xpose.msra.mxu0 %v190
    %349 = vmatprep.subr.mxu0 0.0
    %350 = vmatpush1.xpose.msra.mxu0 %v196
    %351 = vmatprep.subr.mxu0 0.0
    %352 = vmatpush1.xpose.msra.mxu0 %v202
    %353 = vmatprep.subr.mxu0 0.0
    %354 = vmatpush1.xpose.msra.mxu0 %v208
    %355 = vmatprep.subr.mxu0 0.0
    %356 = vmatpush1.xpose.msra.mxu0 %v214
    %357 = vmatprep.subr.mxu0 0.0
    %358 = vmatpush1.xpose.msra.mxu0 %v220
    %359 = vmatprep.subr.mxu0 0.0
    %360 = vmatpush1.xpose.msra.mxu0 %v226
    %361 = vmatprep.subr.mxu0 0.0
    %362 = vmatpush1.xpose.msra.mxu0 %v232
    %363 = vmatprep.subr.mxu0 0.0
    %364 = vmatpush1.xpose.msra.mxu0 0.0
    %365 = vmatprep.subr.mxu0 0.0
    %366 = vmatpush1.xpose.msra.mxu0 0.0
    %367 = vmatprep.subr.mxu0 0.0
    %368 = vmatpush1.xpose.msra.mxu0 0.0
    %369 = vmatprep.subr.mxu0 0.0
    %370 = vmatpush1.xpose.msra.mxu0 0.0
    %371 = vmatprep.subr.mxu0 0.0
    %372 = vmatpush1.xpose.msra.mxu0 0.0
    %373 = vmatprep.subr.mxu0 0.0
    %374 = vmatpush1.xpose.msra.mxu0 0.0
    %375 = vmatprep.subr.mxu0 0.0
    %376 = vmatpush1.xpose.msra.mxu0 0.0
    %377 = vmatprep.subr.mxu0 0.0
    %378 = vmatpush1.xpose.msra.mxu0 0.0
    %379 = vmatprep.subr.mxu0 0.0
    %380 = vmatpush1.xpose.msra.mxu0 0.0
    %381 = vmatprep.subr.mxu0 0.0
    %382 = vmatpush1.xpose.msra.mxu0 0.0
    %383 = vmatprep.subr.mxu0 0.0
    %384 = vmatpush1.xpose.msra.mxu0 0.0
    %385 = vmatprep.subr.mxu0 0.0
    %386 = vmatpush1.xpose.msra.mxu0 0.0
    %387 = vmatprep.subr.mxu0 0.0
    %388 = vmatpush1.xpose.msra.mxu0 0.0
    %389 = vmatprep.subr.mxu0 0.0
    %390 = vmatpush1.xpose.msra.mxu0 0.0
    %391 = vmatprep.subr.mxu0 0.0
    %392 = vmatpush1.xpose.msra.mxu0 0.0
    %393 = vmatprep.subr.mxu0 0.0
    %394 = vmatpush1.xpose.msra.mxu0 0.0
    %395 = vmatprep.subr.mxu0 0.0
    %396 = vmatpush1.xpose.msra.mxu0 0.0
    %397 = vmatprep.subr.mxu0 0.0
    %398 = vmatpush1.xpose.msra.mxu0 0.0
    %399 = vmatprep.subr.mxu0 0.0
    %400 = vmatpush1.xpose.msra.mxu0 0.0
    %401 = vmatprep.subr.mxu0 0.0
    %402 = vmatpush1.xpose.msra.mxu0 0.0
    %403 = vmatprep.subr.mxu0 0.0
    %404 = vmatpush1.xpose.msra.mxu0 0.0
    %405 = vmatprep.subr.mxu0 0.0
    %406 = vmatpush1.xpose.msra.mxu0 0.0
    %407 = vmatprep.subr.mxu0 0.0
    %408 = vmatpush1.xpose.msra.mxu0 0.0
    %409 = vmatprep.subr.mxu0 0.0
    %410 = vmatpush1.xpose.msra.mxu0 0.0
    %411 = vmatprep.mubr.f32.mxu0 0.0
    %412 = vmatmul.mubr.f32.gmra.mrb[0].mxu0 %v188
    %v413 = vpop.f32.mrb[0].mxu0
    %v414 = vadd.f32 %v339, %v413
    %v415 = vpop.f32.mrb[0].mxu0
    %416 = vmatprep.mubr.f32.mxu0 0.0
    %417 = vmatmul.mubr.f32.gmra.mrb[0].mxu0 %v194
    %v418 = vpop.f32.mrb[0].mxu0
    %v419 = vadd.f32 %v340, %v418
    %v420 = vpop.f32.mrb[0].mxu0
    %421 = vmatprep.mubr.f32.mxu0 0.0
    %422 = vmatmul.mubr.f32.gmra.mrb[0].mxu0 %v200
    %v423 = vpop.f32.mrb[0].mxu0
    %v424 = vadd.f32 %v341, %v423
    %v425 = vpop.f32.mrb[0].mxu0
    %426 = vmatprep.mubr.f32.mxu0 0.0
    %427 = vmatmul.mubr.f32.gmra.mrb[0].mxu0 %v206
    %v428 = vpop.f32.mrb[0].mxu0
    %v429 = vadd.f32 %v342, %v428
    %v430 = vpop.f32.mrb[0].mxu0
    %431 = vmatprep.mubr.f32.mxu0 0.0
    %432 = vmatmul.mubr.f32.gmra.mrb[0].mxu0 %v212
    %v433 = vpop.f32.mrb[0].mxu0
    %v434 = vadd.f32 %v343, %v433
    %v435 = vpop.f32.mrb[0].mxu0
    %436 = vmatprep.mubr.f32.mxu0 0.0
    %437 = vmatmul.mubr.f32.gmra.mrb[0].mxu0 %v218
    %v438 = vpop.f32.mrb[0].mxu0
    %v439 = vadd.f32 %v344, %v438
    %v440 = vpop.f32.mrb[0].mxu0
    %441 = vmatprep.mubr.f32.mxu0 0.0
    %442 = vmatmul.mubr.f32.gmra.mrb[0].mxu0 %v224
    %v443 = vpop.f32.mrb[0].mxu0
    %v444 = vadd.f32 %v345, %v443
    %v445 = vpop.f32.mrb[0].mxu0
    %446 = vmatprep.mubr.f32.mxu0 0.0
    %447 = vmatmul.mubr.f32.gmra.mrb[0].mxu0 %v230
    %v448 = vpop.f32.mrb[0].mxu0
    %v449 = vadd.f32 %v346, %v448
    %v450 = vpop.f32.mrb[0].mxu0
    %451 = vdwg.mxu0
    %vm452 = vcmask 523264
    %v453 = vsel %vm452, %v414, -inf
    %454 = vmax.xlane.f32.xlu0 %v453
    %v455 = vpop.xlane.xlu0 %454
    %v456 = vsel %vm452, %v419, -inf
    %457 = vmax.xlane.f32.xlu0 %v456
    %v458 = vpop.xlane.xlu0 %457
    %v459 = vsel %vm452, %v424, -inf
    %460 = vmax.xlane.f32.xlu0 %v459
    %v461 = vpop.xlane.xlu0 %460
    %v462 = vsel %vm452, %v429, -inf
    %463 = vmax.xlane.f32.xlu0 %v462
    %v464 = vpop.xlane.xlu0 %463
    %v465 = vsel %vm452, %v434, -inf
    %466 = vmax.xlane.f32.xlu0 %v465
    %v467 = vpop.xlane.xlu0 %466
    %v468 = vsel %vm452, %v439, -inf
    %469 = vmax.xlane.f32.xlu0 %v468
    %v470 = vpop.xlane.xlu0 %469
    %v471 = vsel %vm452, %v444, -inf
    %472 = vmax.xlane.f32.xlu0 %v471
    %v473 = vpop.xlane.xlu0 %472
    %v474 = vsel %vm452, %v449, -inf
    %475 = vmax.xlane.f32.xlu0 %v474
    %v476 = vpop.xlane.xlu0 %475
    %v477 = vsub.f32 %v414, %v455
    %v478 = vsub.f32 %v419, %v458
    %v479 = vsub.f32 %v424, %v461
    %v480 = vsub.f32 %v429, %v464
    %v481 = vsub.f32 %v434, %v467
    %v482 = vsub.f32 %v439, %v470
    %v483 = vsub.f32 %v444, %v473
    %v484 = vsub.f32 %v449, %v476
    %v485 = vmul.f32 %v477, 1.442695
    %v486 = vpow.pop %v485
    %v487 = vmul.f32 %v478, 1.442695
    %v488 = vpow.pop %v487
    %v489 = vmul.f32 %v479, 1.442695
    %v490 = vpow.pop %v489
    %v491 = vmul.f32 %v480, 1.442695
    %v492 = vpow.pop %v491
    %v493 = vmul.f32 %v481, 1.442695
    %v494 = vpow.pop %v493
    %v495 = vmul.f32 %v482, 1.442695
    %v496 = vpow.pop %v495
    %v497 = vmul.f32 %v483, 1.442695
    %v498 = vpow.pop %v497
    %v499 = vmul.f32 %v484, 1.442695
    %v500 = vpow.pop %v499
    %v501 = vsel %vm452, %v486, 0.0
    %502 = vadd.xlane.f32.xlu0 %v501
    %v503 = vpop.xlane.xlu0 %502
    %v504 = vsel %vm452, %v488, 0.0
    %505 = vadd.xlane.f32.xlu0 %v504
    %v506 = vpop.xlane.xlu0 %505
    %v507 = vsel %vm452, %v490, 0.0
    %508 = vadd.xlane.f32.xlu0 %v507
    %v509 = vpop.xlane.xlu0 %508
    %v510 = vsel %vm452, %v492, 0.0
    %511 = vadd.xlane.f32.xlu0 %v510
    %v512 = vpop.xlane.xlu0 %511
    %v513 = vsel %vm452, %v494, 0.0
    %514 = vadd.xlane.f32.xlu0 %v513
    %v515 = vpop.xlane.xlu0 %514
    %v516 = vsel %vm452, %v496, 0.0
    %517 = vadd.xlane.f32.xlu0 %v516
    %v518 = vpop.xlane.xlu0 %517
    %v519 = vsel %vm452, %v498, 0.0
    %520 = vadd.xlane.f32.xlu0 %v519
    %v521 = vpop.xlane.xlu0 %520
    %v522 = vsel %vm452, %v500, 0.0
    %523 = vadd.xlane.f32.xlu0 %v522
    %v524 = vpop.xlane.xlu0 %523
    %v525 = vrcp.pop %v503
    %v526 = vmul.f32 %v486, %v525
    %v527 = vrcp.pop %v506
    %v528 = vmul.f32 %v488, %v527
    %v529 = vrcp.pop %v509
    %v530 = vmul.f32 %v490, %v529
    %v531 = vrcp.pop %v512
    %v532 = vmul.f32 %v492, %v531
    %v533 = vrcp.pop %v515
    %v534 = vmul.f32 %v494, %v533
    %v535 = vrcp.pop %v518
    %v536 = vmul.f32 %v496, %v535
    %v537 = vrcp.pop %v521
    %v538 = vmul.f32 %v498, %v537
    %v539 = vrcp.pop %v524
    %v540 = vmul.f32 %v500, %v539
    %v542 = vsel %vm452, %v526, 0
    %v545 = vsel %vm452, %v528, 0
    %v548 = vsel %vm452, %v530, 0
    %v551 = vsel %vm452, %v532, 0
    %v554 = vsel %vm452, %v534, 0
    %v557 = vsel %vm452, %v536, 0
    %v560 = vsel %vm452, %v538, 0
    %v563 = vsel %vm452, %v540, 0
    %565 = vmatprep.subr.mxu0 0.0
    %566 = vmatpush1.msra.mxu0 %v301
    %567 = vmatprep.subr.mxu0 0.0
    %568 = vmatpush1.msra.mxu0 %v306
    %569 = vmatprep.subr.mxu0 0.0
    %570 = vmatpush1.msra.mxu0 %v311
    %571 = vmatprep.subr.mxu0 0.0
    %572 = vmatpush1.msra.mxu0 %v316
    %573 = vmatprep.subr.mxu0 0.0
    %574 = vmatpush1.msra.mxu0 %v321
    %575 = vmatprep.subr.mxu0 0.0
    %576 = vmatpush1.msra.mxu0 %v326
    %577 = vmatprep.subr.mxu0 0.0
    %578 = vmatpush1.msra.mxu0 %v331
    %579 = vmatprep.subr.mxu0 0.0
    %580 = vmatpush1.msra.mxu0 %v336
    %581 = vmatprep.subr.mxu0 0.0
    %582 = vmatpush1.msra.mxu0 0.0
    %583 = vmatprep.subr.mxu0 0.0
    %584 = vmatpush1.msra.mxu0 0.0
    %585 = vmatprep.subr.mxu0 0.0
    %586 = vmatpush1.msra.mxu0 0.0
    %587 = vmatprep.subr.mxu0 0.0
    %588 = vmatpush1.msra.mxu0 0.0
    %589 = vmatprep.subr.mxu0 0.0
    %590 = vmatpush1.msra.mxu0 0.0
    %591 = vmatprep.subr.mxu0 0.0
    %592 = vmatpush1.msra.mxu0 0.0
    %593 = vmatprep.subr.mxu0 0.0
    %594 = vmatpush1.msra.mxu0 0.0
    %595 = vmatprep.subr.mxu0 0.0
    %596 = vmatpush1.msra.mxu0 0.0
    %597 = vmatprep.subr.mxu0 0.0
    %598 = vmatpush1.msra.mxu0 0.0
    %599 = vmatprep.subr.mxu0 0.0
    %600 = vmatpush1.msra.mxu0 0.0
    %601 = vmatprep.subr.mxu0 0.0
    %602 = vmatpush1.msra.mxu0 0.0
    %603 = vmatprep.subr.mxu0 0.0
    %604 = vmatpush1.msra.mxu0 0.0
    %605 = vmatprep.subr.mxu0 0.0
    %606 = vmatpush1.msra.mxu0 0.0
    %607 = vmatprep.subr.mxu0 0.0
    %608 = vmatpush1.msra.mxu0 0.0
    %609 = vmatprep.subr.mxu0 0.0
    %610 = vmatpush1.msra.mxu0 0.0
    %611 = vmatprep.subr.mxu0 0.0
    %612 = vmatpush1.msra.mxu0 0.0
    %613 = vmatprep.subr.mxu0 0.0
    %614 = vmatpush1.msra.mxu0 0.0
    %615 = vmatprep.subr.mxu0 0.0
    %616 = vmatpush1.msra.mxu0 0.0
    %617 = vmatprep.subr.mxu0 0.0
    %618 = vmatpush1.msra.mxu0 0.0
    %619 = vmatprep.subr.mxu0 0.0
    %620 = vmatpush1.msra.mxu0 0.0
    %621 = vmatprep.subr.mxu0 0.0
    %622 = vmatpush1.msra.mxu0 0.0
    %623 = vmatprep.subr.mxu0 0.0
    %624 = vmatpush1.msra.mxu0 0.0
    %625 = vmatprep.subr.mxu0 0.0
    %626 = vmatpush1.msra.mxu0 0.0
    %627 = vmatprep.subr.mxu0 0.0
    %628 = vmatpush1.msra.mxu0 0.0
    %629 = vmatprep.mubr.f32.mxu0 0.0
    %630 = vmatmul.mubr.f32.gmra.mrb[0].mxu0 %v542
    %v631 = vpop.f32.mrb[0].mxu0
    %v632 = vadd.f32 0.0, %v631
    %v633 = vpop.f32.mrb[0].mxu0
    %634 = vmatprep.mubr.f32.mxu0 0.0
    %635 = vmatmul.mubr.f32.gmra.mrb[0].mxu0 %v545
    %v636 = vpop.f32.mrb[0].mxu0
    %v637 = vadd.f32 0.0, %v636
    %v638 = vpop.f32.mrb[0].mxu0
    %639 = vmatprep.mubr.f32.mxu0 0.0
    %640 = vmatmul.mubr.f32.gmra.mrb[0].mxu0 %v548
    %v641 = vpop.f32.mrb[0].mxu0
    %v642 = vadd.f32 0.0, %v641
    %v643 = vpop.f32.mrb[0].mxu0
    %644 = vmatprep.mubr.f32.mxu0 0.0
    %645 = vmatmul.mubr.f32.gmra.mrb[0].mxu0 %v551
    %v646 = vpop.f32.mrb[0].mxu0
    %v647 = vadd.f32 0.0, %v646
    %v648 = vpop.f32.mrb[0].mxu0
    %649 = vmatprep.mubr.f32.mxu0 0.0
    %650 = vmatmul.mubr.f32.gmra.mrb[0].mxu0 %v554
    %v651 = vpop.f32.mrb[0].mxu0
    %v652 = vadd.f32 0.0, %v651
    %v653 = vpop.f32.mrb[0].mxu0
    %654 = vmatprep.mubr.f32.mxu0 0.0
    %655 = vmatmul.mubr.f32.gmra.mrb[0].mxu0 %v557
    %v656 = vpop.f32.mrb[0].mxu0
    %v657 = vadd.f32 0.0, %v656
    %v658 = vpop.f32.mrb[0].mxu0
    %659 = vmatprep.mubr.f32.mxu0 0.0
    %660 = vmatmul.mubr.f32.gmra.mrb[0].mxu0 %v560
    %v661 = vpop.f32.mrb[0].mxu0
    %v662 = vadd.f32 0.0, %v661
    %v663 = vpop.f32.mrb[0].mxu0
    %664 = vmatprep.mubr.f32.mxu0 0.0
    %665 = vmatmul.mubr.f32.gmra.mrb[0].mxu0 %v563
    %v666 = vpop.f32.mrb[0].mxu0
    %v667 = vadd.f32 0.0, %v666
    %v668 = vpop.f32.mrb[0].mxu0
    %669 = vdwg.mxu0
    %671 = vrot.lane.b32.xlu0 %v637, 32
    %v672 = vpop.permute.xlu0 %671
    %675 = vrot.lane.b32.xlu0 %v642, 64
    %v676 = vpop.permute.xlu0 %675
    %679 = vrot.lane.b32.xlu0 %v647, 96
    %v680 = vpop.permute.xlu0 %679
    %683 = vrot.lane.b32.xlu0 %v657, 32
    %v684 = vpop.permute.xlu0 %683
    %687 = vrot.lane.b32.xlu0 %v662, 64
    %v688 = vpop.permute.xlu0 %687
    %691 = vrot.lane.b32.xlu0 %v667, 96
    %v692 = vpop.permute.xlu0 %691
    %v694 = vsel %vm96, %v632, %v672
    %v695 = vsel %vm452, %v694, %v676
    %vm696 = vcmask 785408
    %v697 = vsel %vm696, %v695, %v680
    %v698 = vsel %vm96, %v652, %v684
    %v699 = vsel %vm452, %v698, %v688
    %v700 = vsel %vm696, %v699, %v692
    %701 = vst [vmem:[#allocation8] sm:$0xff] %v697
    %702 = vst [vmem:[#allocation8 + $0x8] sm:$0xff] %v700
    // Predicated region
    $region30: #{tpu_custom_call.1} parent=1 // pred_check
      _
    $region31: #{tpu_custom_call.1} parent=1 // pred_check_branch
      %704 = sbr.rel (0) target = $region33
    $region32: #{tpu_custom_call.1} parent=1 // pred_region
      %s706 = ssub.s32 256, 256
      %707 = vsyncadd [#allocation4], %s706
      %s709 = sshll.u32 [#allocation8], 4
      %s710 = int_to_ptr.vmem [resolvable:$true] %s709
      %712 = dma.vmem_to_hbm [thread:$0]  %s710, 256, %s4, [#allocation4]
    $region33: #{tpu_custom_call.1} parent=1 // pred_fallthru
      _
    // Predicated region
    $region34: #{tpu_custom_call.1} parent=1 // pred_check
      _
    $region35: #{tpu_custom_call.1} parent=1 // pred_check_branch
      %714 = sbr.rel (0) target = $region37
    $region36: #{tpu_custom_call.1} parent=1 // pred_region
      %715 = dma.done [#allocation4], 256
    $region37: #{tpu_custom_call.1} parent=1 // pred_fallthru
      _
    %716 = vsyncpa [#allocation3], 1
    %717 = vsyncpa [#allocation6], 1
    %718 = vsyncpa [#allocation4], 1

</llo_original>
